<compile_context>
chip_gen: v7x
topology: tpu7x:2x2x1
jax: 0.10.0
libtpu: 0.0.40
codegen_flags: <defaults>
</compile_context>

<pallas_src>
import functools

import jax
import jax.numpy as jnp
from jax import lax
from jax.experimental import pallas as pl
from jax.experimental.pallas import tpu as pltpu

FUDGE = 1e-07
# (sigmoid(s) + F) * (1 - 2F)  ==  tanh(0.5*s) * _A + _B
_A = 0.5 * (1.0 - 2.0 * FUDGE)
_B = (0.5 + FUDGE) * (1.0 - 2.0 * FUDGE)


def _decoder_kernel_stream(z_row_ref, z_col_ref, o_ref):
    # z_row_ref: (tm, D), z_col_ref: (tn, D), o_ref: (tm, tn)
    # s = z_row @ z_col^T with the transpose folded into the MXU contraction.
    s = lax.dot_general(
        z_row_ref[...],
        z_col_ref[...],
        dimension_numbers=(((1,), (1,)), ((), ())),
        preferred_element_type=jnp.float32,
    )
    o_ref[...] = (jnp.tanh(0.5 * s) * _A + _B).astype(o_ref.dtype)


def _decoder_kernel_resident(z_row_ref, z_all_ref, o_ref, *, tn):
    # z_row_ref: (tm, D), z_all_ref: (N_pad, D) resident in VMEM, o_ref: (tm, tn)
    j0 = pl.multiple_of(pl.program_id(1) * tn, 128)
    z_col = z_all_ref[pl.ds(j0, tn), :]
    s = lax.dot_general(
        z_row_ref[...],
        z_col,
        dimension_numbers=(((1,), (1,)), ((), ())),
        preferred_element_type=jnp.float32,
    )
    o_ref[...] = (jnp.tanh(0.5 * s) * _A + _B).astype(o_ref.dtype)


def _round_up(x, m):
    return ((x + m - 1) // m) * m


def _choose_tiles(n_pad, d, out_itemsize, vmem_budget, col_resident):
    """Largest (tm, tn) dividing n_pad whose buffers fit the VMEM budget."""
    tm_prefs = (512, 256, 128)
    tn_prefs = (2048, 1024, 512, 256, 128)
    for tm in tm_prefs:
        if tm > n_pad or n_pad % tm:
            continue
        for tn in tn_prefs:
            if tn > n_pad or n_pad % tn:
                continue
            out_b = 2 * tm * tn * out_itemsize            # double-buffered out tile
            row_b = 2 * tm * d * 4                        # double-buffered row block
            col_b = (n_pad * d * 4) if col_resident else (2 * tn * d * 4)
            if out_b + row_b + col_b <= vmem_budget:
                return tm, tn
    return min(n_pad, 128), min(n_pad, 128)


@functools.partial(
    jax.jit, static_argnames=("tm", "tn", "out_dtype", "col_resident"))
def inner_product_decoder(z, *, tm=None, tn=None, out_dtype=jnp.float32,
                          col_resident=None):
    """adj = (sigmoid(z z^T) + fudge) * (1 - 2*fudge);  z: [N, D] float32."""
    N, D = z.shape
    n_pad = max(_round_up(N, 128), 128)

    # Keep the whole z resident in VMEM when it is small; otherwise stream
    # (tn, D) column blocks (re-read per row band).
    if col_resident is None:
        col_resident = n_pad * D * 4 <= 4 * 1024 * 1024

    out_itemsize = jnp.dtype(out_dtype).itemsize
    if tm is None or tn is None:
        auto_tm, auto_tn = _choose_tiles(
            n_pad, D, out_itemsize,
            vmem_budget=14 * 1024 * 1024,      # conservative: v5e's 16 MiB default
            col_resident=col_resident)
        tm = tm if tm is not None else auto_tm
        tn = tn if tn is not None else auto_tn
    assert n_pad % tm == 0 and n_pad % tn == 0, "padded N must be divisible by tiles"

    z_pad = z if n_pad == N else jnp.pad(z, ((0, n_pad - N), (0, 0)))

    row_spec = pl.BlockSpec((tm, D), lambda i, j: (i, 0))
    if col_resident:
        kernel = functools.partial(_decoder_kernel_resident, tn=tn)
        col_spec = pl.BlockSpec((n_pad, D), lambda i, j: (0, 0))   # fetched once
    else:
        kernel = _decoder_kernel_stream
        col_spec = pl.BlockSpec((tn, D), lambda i, j: (j, 0))

    # cols innermost: the z row block (index (i, 0)) is reused across j.
    grid = (n_pad // tm, n_pad // tn)
    out = pl.pallas_call(
        kernel,
        out_shape=jax.ShapeDtypeStruct((n_pad, n_pad), out_dtype),
        grid_spec=pltpu.PrefetchScalarGridSpec(
            num_scalar_prefetch=0,
            grid=grid,
            in_specs=[row_spec, col_spec],
            out_specs=pl.BlockSpec((tm, tn), lambda i, j: (i, j)),
        ),
        compiler_params=pltpu.CompilerParams(
            dimension_semantics=("parallel", "parallel"),
        ),
    )(z_pad, z_pad)
    return out[:N, :N]


def _reference(z):
    s = jnp.dot(z, z.T, precision=jax.lax.Precision.HIGHEST)
    return (jax.nn.sigmoid(s) + FUDGE) * (1.0 - 2.0 * FUDGE)


if __name__ == "__main__":
    key = jax.random.PRNGKey(0)
    N, D = 256, 32  # small synthetic latent embedding (num_nodes x hidden)
    z = jax.random.normal(key, (N, D), dtype=jnp.float32)
    ref = _reference(z)

    # 1) Default path: resident column operand, single large lane-dense block.
    adj = jax.block_until_ready(inner_product_decoder(z))
    assert adj.shape == (N, N)
    assert jnp.allclose(adj, ref, atol=2e-3, rtol=0.0), "default path mismatch"

    # 2) Streaming column blocks + multi-block grid.
    adj_tiled = jax.block_until_ready(
        inner_product_decoder(z, tm=128, tn=128, col_resident=False))
    assert jnp.allclose(adj_tiled, ref, atol=2e-3, rtol=0.0), "tiled/stream mismatch"

    # 3) Non-divisible N (padded internally to a multiple of 128).
    N2 = 200
    z2 = z[:N2]
    ref2 = _reference(z2)
    adj2 = jax.block_until_ready(inner_product_decoder(z2))
    assert adj2.shape == (N2, N2)
    assert jnp.allclose(adj2, ref2, atol=2e-3, rtol=0.0), "padded-N mismatch"

    # 4) Optional bf16 output (halves write bandwidth; fudge clamp not
    #    representable in bf16, so looser tolerance).
    adj_bf16 = jax.block_until_ready(
        inner_product_decoder(z, out_dtype=jnp.bfloat16))
    assert jnp.allclose(adj_bf16.astype(jnp.float32), ref,
                        atol=8e-3, rtol=0.0), "bf16-output mismatch"

    print("KERNEL_OK")
</pallas_src>

<mosaic_0001>
module attributes {stable_mosaic.version = 11 : i64} {
  func.func @_decoder_kernel_resident(%arg0: i32, %arg1: i32, %arg2: memref<256x32xf32, #tpu.memory_space<vmem>>, %arg3: memref<256x32xf32, #tpu.memory_space<vmem>>, %arg4: memref<256x256xf32, #tpu.memory_space<vmem>>) attributes {dimension_semantics = [#tpu.dimension_semantics<parallel>, #tpu.dimension_semantics<parallel>], iteration_bounds = array<i64: 1, 1>, scalar_prefetch = 0 : i64, scratch_operands = 0 : i64, tpu.core_type = #tpu.core_type<tc>, window_params = [{transform_indices = @transform_0, window_bounds = array<i64: 256, 32>}, {pipeline_mode = #tpu.pipeline_mode<synchronous>, transform_indices = @transform_1, window_bounds = array<i64: 256, 32>}, {transform_indices = @transform_2, window_bounds = array<i64: 256, 256>}]} {
    %c256_i32 = arith.constant 256 : i32
    %0 = arith.muli %arg1, %c256_i32 : i32
    %1 = tpu.assume_multiple %0, 128 : i32
    %2 = arith.index_cast %1 : i32 to index
    %c0 = arith.constant 0 : index
    %3 = vector.load %arg3[%2, %c0] : memref<256x32xf32, #tpu.memory_space<vmem>>, vector<256x32xf32>
    %c0_0 = arith.constant 0 : index
    %c0_1 = arith.constant 0 : index
    %4 = vector.load %arg2[%c0_0, %c0_1] : memref<256x32xf32, #tpu.memory_space<vmem>>, vector<256x32xf32>
    %cst = arith.constant dense<0.000000e+00> : vector<256x256xf32>
    %5 = tpu.matmul %4, %3, %cst {dimension_numbers = #tpu.dot_dimension_numbers<[1], [1], [0], [0], [0, 0, 1, 0], [], []>} : vector<256x32xf32>, vector<256x32xf32>, vector<256x256xf32> -> vector<256x256xf32>
    %cst_2 = arith.constant 5.000000e-01 : f32
    %6 = vector.broadcast %cst_2 : f32 to vector<256x256xf32>
    %7 = arith.mulf %6, %5 : vector<256x256xf32>
    %8 = math.tanh %7 : vector<256x256xf32>
    %cst_3 = arith.constant 0.499999911 : f32
    %9 = vector.broadcast %cst_3 : f32 to vector<256x256xf32>
    %10 = arith.mulf %8, %9 : vector<256x256xf32>
    %cst_4 = arith.constant 5.000000e-01 : f32
    %11 = vector.broadcast %cst_4 : f32 to vector<256x256xf32>
    %12 = arith.addf %10, %11 : vector<256x256xf32>
    %c0_5 = arith.constant 0 : index
    %c0_6 = arith.constant 0 : index
    %13 = vector.load %arg4[%c0_5, %c0_6] : memref<256x256xf32, #tpu.memory_space<vmem>>, vector<256x256xf32>
    tpu.vector_store %arg4[%c0_5, %c0_6], %12 {strides = array<i32>} : memref<256x256xf32, #tpu.memory_space<vmem>>, vector<256x256xf32>,
    return
  }
  func.func @transform_0(%arg0: i32, %arg1: i32) -> (i32, i32) {
    %c0_i32 = arith.constant 0 : i32
    %c0_i32_0 = arith.constant 0 : i32
    return %arg0, %c0_i32 : i32, i32
  }
  func.func @transform_1(%arg0: i32, %arg1: i32) -> (i32, i32) {
    %c0_i32 = arith.constant 0 : i32
    %c0_i32_0 = arith.constant 0 : i32
    %c0_i32_1 = arith.constant 0 : i32
    return %c0_i32, %c0_i32_0 : i32, i32
  }
  func.func @transform_2(%arg0: i32, %arg1: i32) -> (i32, i32) {
    %c0_i32 = arith.constant 0 : i32
    return %arg0, %arg1 : i32, i32
  }
}

</mosaic_0001>

<llo_original>
// kernel: inner_product_decoder.1
$region0: #{inner_product_decoder.1}
  #allocation0 [shape = 'u32[]', space=smem, size = 0x4, offset = 0x4, fixed_abs, tag = 'smem constant byte address 0x4 - core index']
  #allocation1 [shape = 'u32[144,128]{1,0:T(1,128)}', space=vmem, size = 0x12000, scoped, tag = 'internal scratch']
  %s0 = inlined_call_operand.vmem [shape: f32[256,32], index: 0, kind: input, shape index: {}, may-alias: {0,1}]
  %s1 = inlined_call_operand.vmem [shape: f32[256,32], index: 1, kind: input, shape index: {}, may-alias: {0,1}]
  %s2 = inlined_call_operand.hbm [shape: f32[256,256], index: 2, kind: output, shape index: {}]
  %s3 = sld [smem:[#allocation0]]
  $region18: #{inner_product_decoder.1} parent=0
    _
  %s5 = ssub.s32 1, %s3
  %s6 = scalar_select 0, %s5, %s3
  $region1: #{inner_product_decoder.1} parent=0
    #allocation2 [shape = 'u8[262144]{0}', space=vmem, size = 0x40000, scoped, tag = 'output window, operand 0, single buffered']
    #allocation3 [shape = 's32[1]{0}', space=sflag, size = 0x4, scoped, tag = 'scoped memory for inner_product_decoder.1']
    %7 = vsyncpa [#allocation3], 0
    // Predicated region
    $region2: #{inner_product_decoder.1} parent=1 // pred_check
      _
    $region3: #{inner_product_decoder.1} parent=1 // pred_check_branch
      %9 = sbr.rel (0) target = $region5
    $region4: #{inner_product_decoder.1} parent=1 // pred_region
      _
    $region5: #{inner_product_decoder.1} parent=1 // pred_fallthru
      _
    // Predicated region
    $region6: #{inner_product_decoder.1} parent=1 // pred_check
      _
    $region7: #{inner_product_decoder.1} parent=1 // pred_check_branch
      %11 = sbr.rel (0) target = $region9
    $region8: #{inner_product_decoder.1} parent=1 // pred_region
      _
    $region9: #{inner_product_decoder.1} parent=1 // pred_fallthru
      _
    %s12 = smul.u32 0, 256
    %s13 = scalar_lea.vmem %s1, %s12
    %v14 = vld [vmem:[%s13] sm:$0xff]
    %v15 = vld [vmem:[%s13 + $0x8] sm:$0xff]
    %v16 = vld [vmem:[%s13 + $0x10] sm:$0xff]
    %v17 = vld [vmem:[%s13 + $0x18] sm:$0xff]
    %v18 = vld [vmem:[%s13 + $0x20] sm:$0xff]
    %v19 = vld [vmem:[%s13 + $0x28] sm:$0xff]
    %v20 = vld [vmem:[%s13 + $0x30] sm:$0xff]
    %v21 = vld [vmem:[%s13 + $0x38] sm:$0xff]
    %v22 = vld [vmem:[%s13 + $0x40] sm:$0xff]
    %v23 = vld [vmem:[%s13 + $0x48] sm:$0xff]
    %v24 = vld [vmem:[%s13 + $0x50] sm:$0xff]
    %v25 = vld [vmem:[%s13 + $0x58] sm:$0xff]
    %v26 = vld [vmem:[%s13 + $0x60] sm:$0xff]
    %v27 = vld [vmem:[%s13 + $0x68] sm:$0xff]
    %v28 = vld [vmem:[%s13 + $0x70] sm:$0xff]
    %v29 = vld [vmem:[%s13 + $0x78] sm:$0xff]
    %v30 = vld [vmem:[%s13 + $0x80] sm:$0xff]
    %v31 = vld [vmem:[%s13 + $0x88] sm:$0xff]
    %v32 = vld [vmem:[%s13 + $0x90] sm:$0xff]
    %v33 = vld [vmem:[%s13 + $0x98] sm:$0xff]
    %v34 = vld [vmem:[%s13 + $0xa0] sm:$0xff]
    %v35 = vld [vmem:[%s13 + $0xa8] sm:$0xff]
    %v36 = vld [vmem:[%s13 + $0xb0] sm:$0xff]
    %v37 = vld [vmem:[%s13 + $0xb8] sm:$0xff]
    %v38 = vld [vmem:[%s13 + $0xc0] sm:$0xff]
    %v39 = vld [vmem:[%s13 + $0xc8] sm:$0xff]
    %v40 = vld [vmem:[%s13 + $0xd0] sm:$0xff]
    %v41 = vld [vmem:[%s13 + $0xd8] sm:$0xff]
    %v42 = vld [vmem:[%s13 + $0xe0] sm:$0xff]
    %v43 = vld [vmem:[%s13 + $0xe8] sm:$0xff]
    %v44 = vld [vmem:[%s13 + $0xf0] sm:$0xff]
    %v45 = vld [vmem:[%s13 + $0xf8] sm:$0xff]
    %v46 = vld [vmem:[%s0] sm:$0xff]
    %v47 = vld [vmem:[%s0 + $0x8] sm:$0xff]
    %v48 = vld [vmem:[%s0 + $0x10] sm:$0xff]
    %v49 = vld [vmem:[%s0 + $0x18] sm:$0xff]
    %v50 = vld [vmem:[%s0 + $0x20] sm:$0xff]
    %v51 = vld [vmem:[%s0 + $0x28] sm:$0xff]
    %v52 = vld [vmem:[%s0 + $0x30] sm:$0xff]
    %v53 = vld [vmem:[%s0 + $0x38] sm:$0xff]
    %v54 = vld [vmem:[%s0 + $0x40] sm:$0xff]
    %v55 = vld [vmem:[%s0 + $0x48] sm:$0xff]
    %v56 = vld [vmem:[%s0 + $0x50] sm:$0xff]
    %v57 = vld [vmem:[%s0 + $0x58] sm:$0xff]
    %v58 = vld [vmem:[%s0 + $0x60] sm:$0xff]
    %v59 = vld [vmem:[%s0 + $0x68] sm:$0xff]
    %v60 = vld [vmem:[%s0 + $0x70] sm:$0xff]
    %v61 = vld [vmem:[%s0 + $0x78] sm:$0xff]
    %v62 = vld [vmem:[%s0 + $0x80] sm:$0xff]
    %v63 = vld [vmem:[%s0 + $0x88] sm:$0xff]
    %v64 = vld [vmem:[%s0 + $0x90] sm:$0xff]
    %v65 = vld [vmem:[%s0 + $0x98] sm:$0xff]
    %v66 = vld [vmem:[%s0 + $0xa0] sm:$0xff]
    %v67 = vld [vmem:[%s0 + $0xa8] sm:$0xff]
    %v68 = vld [vmem:[%s0 + $0xb0] sm:$0xff]
    %v69 = vld [vmem:[%s0 + $0xb8] sm:$0xff]
    %v70 = vld [vmem:[%s0 + $0xc0] sm:$0xff]
    %v71 = vld [vmem:[%s0 + $0xc8] sm:$0xff]
    %v72 = vld [vmem:[%s0 + $0xd0] sm:$0xff]
    %v73 = vld [vmem:[%s0 + $0xd8] sm:$0xff]
    %v74 = vld [vmem:[%s0 + $0xe0] sm:$0xff]
    %v75 = vld [vmem:[%s0 + $0xe8] sm:$0xff]
    %v76 = vld [vmem:[%s0 + $0xf0] sm:$0xff]
    %v77 = vld [vmem:[%s0 + $0xf8] sm:$0xff]
    %vm78 = vcmask 261120
    %v80 = vsel %vm78, %v46, 0
    %v83 = vsel %vm78, %v47, 0
    %v86 = vsel %vm78, %v48, 0
    %v89 = vsel %vm78, %v49, 0
    %v92 = vsel %vm78, %v50, 0
    %v95 = vsel %vm78, %v51, 0
    %v98 = vsel %vm78, %v52, 0
    %v101 = vsel %vm78, %v53, 0
    %v104 = vsel %vm78, %v54, 0
    %v107 = vsel %vm78, %v55, 0
    %v110 = vsel %vm78, %v56, 0
    %v113 = vsel %vm78, %v57, 0
    %v116 = vsel %vm78, %v58, 0
    %v119 = vsel %vm78, %v59, 0
    %v122 = vsel %vm78, %v60, 0
    %v125 = vsel %vm78, %v61, 0
    %v128 = vsel %vm78, %v62, 0
    %v131 = vsel %vm78, %v63, 0
    %v134 = vsel %vm78, %v64, 0
    %v137 = vsel %vm78, %v65, 0
    %v140 = vsel %vm78, %v66, 0
    %v143 = vsel %vm78, %v67, 0
    %v146 = vsel %vm78, %v68, 0
    %v149 = vsel %vm78, %v69, 0
    %v152 = vsel %vm78, %v70, 0
    %v155 = vsel %vm78, %v71, 0
    %v158 = vsel %vm78, %v72, 0
    %v161 = vsel %vm78, %v73, 0
    %v164 = vsel %vm78, %v74, 0
    %v167 = vsel %vm78, %v75, 0
    %v170 = vsel %vm78, %v76, 0
    %v173 = vsel %vm78, %v77, 0
    %v176 = vsel %vm78, %v14, 0
    %v179 = vsel %vm78, %v15, 0
    %v182 = vsel %vm78, %v16, 0
    %v185 = vsel %vm78, %v17, 0
    %v188 = vsel %vm78, %v18, 0
    %v191 = vsel %vm78, %v19, 0
    %v194 = vsel %vm78, %v20, 0
    %v197 = vsel %vm78, %v21, 0
    %v200 = vsel %vm78, %v22, 0
    %v203 = vsel %vm78, %v23, 0
    %v206 = vsel %vm78, %v24, 0
    %v209 = vsel %vm78, %v25, 0
    %v212 = vsel %vm78, %v26, 0
    %v215 = vsel %vm78, %v27, 0
    %v218 = vsel %vm78, %v28, 0
    %v221 = vsel %vm78, %v29, 0
    %v224 = vsel %vm78, %v30, 0
    %v227 = vsel %vm78, %v31, 0
    %v230 = vsel %vm78, %v32, 0
    %v233 = vsel %vm78, %v33, 0
    %v236 = vsel %vm78, %v34, 0
    %v239 = vsel %vm78, %v35, 0
    %v242 = vsel %vm78, %v36, 0
    %v245 = vsel %vm78, %v37, 0
    %v248 = vsel %vm78, %v38, 0
    %v251 = vsel %vm78, %v39, 0
    %v254 = vsel %vm78, %v40, 0
    %v257 = vsel %vm78, %v41, 0
    %v260 = vsel %vm78, %v42, 0
    %v263 = vsel %vm78, %v43, 0
    %v266 = vsel %vm78, %v44, 0
    %v269 = vsel %vm78, %v45, 0
    %271 = vmatprep.subr.mxu0 0.0
    %272 = vmatpush1.xpose.msra.mxu0 %v176
    %273 = vmatprep.subr.mxu0 0.0
    %274 = vmatpush1.xpose.msra.mxu0 %v179
    %275 = vmatprep.subr.mxu0 0.0
    %276 = vmatpush1.xpose.msra.mxu0 %v182
    %277 = vmatprep.subr.mxu0 0.0
    %278 = vmatpush1.xpose.msra.mxu0 %v185
    %279 = vmatprep.subr.mxu0 0.0
    %280 = vmatpush1.xpose.msra.mxu0 %v188
    %281 = vmatprep.subr.mxu0 0.0
    %282 = vmatpush1.xpose.msra.mxu0 %v191
    %283 = vmatprep.subr.mxu0 0.0
    %284 = vmatpush1.xpose.msra.mxu0 %v194
    %285 = vmatprep.subr.mxu0 0.0
    %286 = vmatpush1.xpose.msra.mxu0 %v197
    %287 = vmatprep.subr.mxu0 0.0
    %288 = vmatpush1.xpose.msra.mxu0 %v200
    %289 = vmatprep.subr.mxu0 0.0
    %290 = vmatpush1.xpose.msra.mxu0 %v203
    %291 = vmatprep.subr.mxu0 0.0
    %292 = vmatpush1.xpose.msra.mxu0 %v206
    %293 = vmatprep.subr.mxu0 0.0
    %294 = vmatpush1.xpose.msra.mxu0 %v209
    %295 = vmatprep.subr.mxu0 0.0
    %296 = vmatpush1.xpose.msra.mxu0 %v212
    %297 = vmatprep.subr.mxu0 0.0
    %298 = vmatpush1.xpose.msra.mxu0 %v215
    %299 = vmatprep.subr.mxu0 0.0
    %300 = vmatpush1.xpose.msra.mxu0 %v218
    %301 = vmatprep.subr.mxu0 0.0
    %302 = vmatpush1.xpose.msra.mxu0 %v221
    %303 = vmatprep.subr.mxu0 0.0
    %304 = vmatpush1.xpose.msra.mxu0 %v224
    %305 = vmatprep.subr.mxu0 0.0
    %306 = vmatpush1.xpose.msra.mxu0 %v227
    %307 = vmatprep.subr.mxu0 0.0
    %308 = vmatpush1.xpose.msra.mxu0 %v230
    %309 = vmatprep.subr.mxu0 0.0
    %310 = vmatpush1.xpose.msra.mxu0 %v233
    %311 = vmatprep.subr.mxu0 0.0
    %312 = vmatpush1.xpose.msra.mxu0 %v236
    %313 = vmatprep.subr.mxu0 0.0
    %314 = vmatpush1.xpose.msra.mxu0 %v239
    %315 = vmatprep.subr.mxu0 0.0
    %316 = vmatpush1.xpose.msra.mxu0 %v242
    %317 = vmatprep.subr.mxu0 0.0
    %318 = vmatpush1.xpose.msra.mxu0 %v245
    %319 = vmatprep.subr.mxu0 0.0
    %320 = vmatpush1.xpose.msra.mxu0 %v248
    %321 = vmatprep.subr.mxu0 0.0
    %322 = vmatpush1.xpose.msra.mxu0 %v251
    %323 = vmatprep.subr.mxu0 0.0
    %324 = vmatpush1.xpose.msra.mxu0 %v254
    %325 = vmatprep.subr.mxu0 0.0
    %326 = vmatpush1.xpose.msra.mxu0 %v257
    %327 = vmatprep.subr.mxu0 0.0
    %328 = vmatpush1.xpose.msra.mxu0 %v260
    %329 = vmatprep.subr.mxu0 0.0
    %330 = vmatpush1.xpose.msra.mxu0 %v263
    %331 = vmatprep.subr.mxu0 0.0
    %332 = vmatpush1.xpose.msra.mxu0 %v266
    %333 = vmatprep.subr.mxu0 0.0
    %334 = vmatpush1.xpose.msra.mxu0 %v269
    %335 = vmatprep.mubr.f32.mxu0 0.0
    %336 = vmatmul.mubr.f32.gmra.mrb[0].mxu0 %v80
    %v337 = vpop.f32.mrb[0].mxu0
    %v338 = vadd.f32 0.0, %v337
    %v339 = vpop.f32.mrb[0].mxu0
    %v340 = vadd.f32 0.0, %v339
    %341 = vmatprep.mubr.f32.mxu0 0.0
    %342 = vmatmul.mubr.f32.gmra.mrb[0].mxu0 %v83
    %v343 = vpop.f32.mrb[0].mxu0
    %v344 = vadd.f32 0.0, %v343
    %v345 = vpop.f32.mrb[0].mxu0
    %v346 = vadd.f32 0.0, %v345
    %347 = vmatprep.mubr.f32.mxu0 0.0
    %348 = vmatmul.mubr.f32.gmra.mrb[0].mxu0 %v86
    %v349 = vpop.f32.mrb[0].mxu0
    %v350 = vadd.f32 0.0, %v349
    %v351 = vpop.f32.mrb[0].mxu0
    %v352 = vadd.f32 0.0, %v351
    %353 = vmatprep.mubr.f32.mxu0 0.0
    %354 = vmatmul.mubr.f32.gmra.mrb[0].mxu0 %v89
    %v355 = vpop.f32.mrb[0].mxu0
    %v356 = vadd.f32 0.0, %v355
    %v357 = vpop.f32.mrb[0].mxu0
    %v358 = vadd.f32 0.0, %v357
    %359 = vmatprep.mubr.f32.mxu0 0.0
    %360 = vmatmul.mubr.f32.gmra.mrb[0].mxu0 %v92
    %v361 = vpop.f32.mrb[0].mxu0
    %v362 = vadd.f32 0.0, %v361
    %v363 = vpop.f32.mrb[0].mxu0
    %v364 = vadd.f32 0.0, %v363
    %365 = vmatprep.mubr.f32.mxu0 0.0
    %366 = vmatmul.mubr.f32.gmra.mrb[0].mxu0 %v95
    %v367 = vpop.f32.mrb[0].mxu0
    %v368 = vadd.f32 0.0, %v367
    %v369 = vpop.f32.mrb[0].mxu0
    %v370 = vadd.f32 0.0, %v369
    %371 = vmatprep.mubr.f32.mxu0 0.0
    %372 = vmatmul.mubr.f32.gmra.mrb[0].mxu0 %v98
    %v373 = vpop.f32.mrb[0].mxu0
    %v374 = vadd.f32 0.0, %v373
    %v375 = vpop.f32.mrb[0].mxu0
    %v376 = vadd.f32 0.0, %v375
    %377 = vmatprep.mubr.f32.mxu0 0.0
    %378 = vmatmul.mubr.f32.gmra.mrb[0].mxu0 %v101
    %v379 = vpop.f32.mrb[0].mxu0
    %v380 = vadd.f32 0.0, %v379
    %v381 = vpop.f32.mrb[0].mxu0
    %v382 = vadd.f32 0.0, %v381
    %383 = vmatprep.mubr.f32.mxu0 0.0
    %384 = vmatmul.mubr.f32.gmra.mrb[0].mxu0 %v104
    %v385 = vpop.f32.mrb[0].mxu0
    %v386 = vadd.f32 0.0, %v385
    %v387 = vpop.f32.mrb[0].mxu0
    %v388 = vadd.f32 0.0, %v387
    %389 = vmatprep.mubr.f32.mxu0 0.0
    %390 = vmatmul.mubr.f32.gmra.mrb[0].mxu0 %v107
    %v391 = vpop.f32.mrb[0].mxu0
    %v392 = vadd.f32 0.0, %v391
    %v393 = vpop.f32.mrb[0].mxu0
    %v394 = vadd.f32 0.0, %v393
    %395 = vmatprep.mubr.f32.mxu0 0.0
    %396 = vmatmul.mubr.f32.gmra.mrb[0].mxu0 %v110
    %v397 = vpop.f32.mrb[0].mxu0
    %v398 = vadd.f32 0.0, %v397
    %v399 = vpop.f32.mrb[0].mxu0
    %v400 = vadd.f32 0.0, %v399
    %401 = vmatprep.mubr.f32.mxu0 0.0
    %402 = vmatmul.mubr.f32.gmra.mrb[0].mxu0 %v113
    %v403 = vpop.f32.mrb[0].mxu0
    %v404 = vadd.f32 0.0, %v403
    %v405 = vpop.f32.mrb[0].mxu0
    %v406 = vadd.f32 0.0, %v405
    %407 = vmatprep.mubr.f32.mxu0 0.0
    %408 = vmatmul.mubr.f32.gmra.mrb[0].mxu0 %v116
    %v409 = vpop.f32.mrb[0].mxu0
    %v410 = vadd.f32 0.0, %v409
    %v411 = vpop.f32.mrb[0].mxu0
    %v412 = vadd.f32 0.0, %v411
    %413 = vmatprep.mubr.f32.mxu0 0.0
    %414 = vmatmul.mubr.f32.gmra.mrb[0].mxu0 %v119
    %v415 = vpop.f32.mrb[0].mxu0
    %v416 = vadd.f32 0.0, %v415
    %v417 = vpop.f32.mrb[0].mxu0
    %v418 = vadd.f32 0.0, %v417
    %419 = vmatprep.mubr.f32.mxu0 0.0
    %420 = vmatmul.mubr.f32.gmra.mrb[0].mxu0 %v122
    %v421 = vpop.f32.mrb[0].mxu0
    %v422 = vadd.f32 0.0, %v421
    %v423 = vpop.f32.mrb[0].mxu0
    %v424 = vadd.f32 0.0, %v423
    %425 = vmatprep.mubr.f32.mxu0 0.0
    %426 = vmatmul.mubr.f32.gmra.mrb[0].mxu0 %v125
    %v427 = vpop.f32.mrb[0].mxu0
    %v428 = vadd.f32 0.0, %v427
    %v429 = vpop.f32.mrb[0].mxu0
    %v430 = vadd.f32 0.0, %v429
    %431 = vmatprep.mubr.f32.mxu0 0.0
    %432 = vmatmul.mubr.f32.gmra.mrb[0].mxu0 %v128
    %v433 = vpop.f32.mrb[0].mxu0
    %v434 = vadd.f32 0.0, %v433
    %v435 = vpop.f32.mrb[0].mxu0
    %v436 = vadd.f32 0.0, %v435
    %437 = vmatprep.mubr.f32.mxu0 0.0
    %438 = vmatmul.mubr.f32.gmra.mrb[0].mxu0 %v131
    %v439 = vpop.f32.mrb[0].mxu0
    %v440 = vadd.f32 0.0, %v439
    %v441 = vpop.f32.mrb[0].mxu0
    %v442 = vadd.f32 0.0, %v441
    %443 = vmatprep.mubr.f32.mxu0 0.0
    %444 = vmatmul.mubr.f32.gmra.mrb[0].mxu0 %v134
    %v445 = vpop.f32.mrb[0].mxu0
    %v446 = vadd.f32 0.0, %v445
    %v447 = vpop.f32.mrb[0].mxu0
    %v448 = vadd.f32 0.0, %v447
    %449 = vmatprep.mubr.f32.mxu0 0.0
    %450 = vmatmul.mubr.f32.gmra.mrb[0].mxu0 %v137
    %v451 = vpop.f32.mrb[0].mxu0
    %v452 = vadd.f32 0.0, %v451
    %v453 = vpop.f32.mrb[0].mxu0
    %v454 = vadd.f32 0.0, %v453
    %455 = vmatprep.mubr.f32.mxu0 0.0
    %456 = vmatmul.mubr.f32.gmra.mrb[0].mxu0 %v140
    %v457 = vpop.f32.mrb[0].mxu0
    %v458 = vadd.f32 0.0, %v457
    %v459 = vpop.f32.mrb[0].mxu0
    %v460 = vadd.f32 0.0, %v459
    %461 = vmatprep.mubr.f32.mxu0 0.0
    %462 = vmatmul.mubr.f32.gmra.mrb[0].mxu0 %v143
    %v463 = vpop.f32.mrb[0].mxu0
    %v464 = vadd.f32 0.0, %v463
    %v465 = vpop.f32.mrb[0].mxu0
    %v466 = vadd.f32 0.0, %v465
    %467 = vmatprep.mubr.f32.mxu0 0.0
    %468 = vmatmul.mubr.f32.gmra.mrb[0].mxu0 %v146
    %v469 = vpop.f32.mrb[0].mxu0
    %v470 = vadd.f32 0.0, %v469
    %v471 = vpop.f32.mrb[0].mxu0
    %v472 = vadd.f32 0.0, %v471
    %473 = vmatprep.mubr.f32.mxu0 0.0
    %474 = vmatmul.mubr.f32.gmra.mrb[0].mxu0 %v149
    %v475 = vpop.f32.mrb[0].mxu0
    %v476 = vadd.f32 0.0, %v475
    %v477 = vpop.f32.mrb[0].mxu0
    %v478 = vadd.f32 0.0, %v477
    %479 = vmatprep.mubr.f32.mxu0 0.0
    %480 = vmatmul.mubr.f32.gmra.mrb[0].mxu0 %v152
    %v481 = vpop.f32.mrb[0].mxu0
    %v482 = vadd.f32 0.0, %v481
    %v483 = vpop.f32.mrb[0].mxu0
    %v484 = vadd.f32 0.0, %v483
    %485 = vmatprep.mubr.f32.mxu0 0.0
    %486 = vmatmul.mubr.f32.gmra.mrb[0].mxu0 %v155
    %v487 = vpop.f32.mrb[0].mxu0
    %v488 = vadd.f32 0.0, %v487
    %v489 = vpop.f32.mrb[0].mxu0
    %v490 = vadd.f32 0.0, %v489
    %491 = vmatprep.mubr.f32.mxu0 0.0
    %492 = vmatmul.mubr.f32.gmra.mrb[0].mxu0 %v158
    %v493 = vpop.f32.mrb[0].mxu0
    %v494 = vadd.f32 0.0, %v493
    %v495 = vpop.f32.mrb[0].mxu0
    %v496 = vadd.f32 0.0, %v495
    %497 = vmatprep.mubr.f32.mxu0 0.0
    %498 = vmatmul.mubr.f32.gmra.mrb[0].mxu0 %v161
    %v499 = vpop.f32.mrb[0].mxu0
    %v500 = vadd.f32 0.0, %v499
    %v501 = vpop.f32.mrb[0].mxu0
    %v502 = vadd.f32 0.0, %v501
    %503 = vmatprep.mubr.f32.mxu0 0.0
    %504 = vmatmul.mubr.f32.gmra.mrb[0].mxu0 %v164
    %v505 = vpop.f32.mrb[0].mxu0
    %v506 = vadd.f32 0.0, %v505
    %v507 = vpop.f32.mrb[0].mxu0
    %v508 = vadd.f32 0.0, %v507
    %509 = vmatprep.mubr.f32.mxu0 0.0
    %510 = vmatmul.mubr.f32.gmra.mrb[0].mxu0 %v167
    %v511 = vpop.f32.mrb[0].mxu0
    %v512 = vadd.f32 0.0, %v511
    %v513 = vpop.f32.mrb[0].mxu0
    %v514 = vadd.f32 0.0, %v513
    %515 = vmatprep.mubr.f32.mxu0 0.0
    %516 = vmatmul.mubr.f32.gmra.mrb[0].mxu0 %v170
    %v517 = vpop.f32.mrb[0].mxu0
    %v518 = vadd.f32 0.0, %v517
    %v519 = vpop.f32.mrb[0].mxu0
    %v520 = vadd.f32 0.0, %v519
    %521 = vmatprep.mubr.f32.mxu0 0.0
    %522 = vmatmul.mubr.f32.gmra.mrb[0].mxu0 %v173
    %v523 = vpop.f32.mrb[0].mxu0
    %v524 = vadd.f32 0.0, %v523
    %v525 = vpop.f32.mrb[0].mxu0
    %v526 = vadd.f32 0.0, %v525
    %527 = vdwg.mxu0
    %v528 = vmul.f32 %v338, 0.5
    %v529 = vmul.f32 %v340, 0.5
    %v530 = vmul.f32 %v344, 0.5
    %v531 = vmul.f32 %v346, 0.5
    %v532 = vmul.f32 %v350, 0.5
    %v533 = vmul.f32 %v352, 0.5
    %v534 = vmul.f32 %v356, 0.5
    %v535 = vmul.f32 %v358, 0.5
    %v536 = vmul.f32 %v362, 0.5
    %v537 = vmul.f32 %v364, 0.5
    %v538 = vmul.f32 %v368, 0.5
    %v539 = vmul.f32 %v370, 0.5
    %v540 = vmul.f32 %v374, 0.5
    %v541 = vmul.f32 %v376, 0.5
    %v542 = vmul.f32 %v380, 0.5
    %v543 = vmul.f32 %v382, 0.5
    %v544 = vmul.f32 %v386, 0.5
    %v545 = vmul.f32 %v388, 0.5
    %v546 = vmul.f32 %v392, 0.5
    %v547 = vmul.f32 %v394, 0.5
    %v548 = vmul.f32 %v398, 0.5
    %v549 = vmul.f32 %v400, 0.5
    %v550 = vmul.f32 %v404, 0.5
    %v551 = vmul.f32 %v406, 0.5
    %v552 = vmul.f32 %v410, 0.5
    %v553 = vmul.f32 %v412, 0.5
    %v554 = vmul.f32 %v416, 0.5
    %v555 = vmul.f32 %v418, 0.5
    %v556 = vmul.f32 %v422, 0.5
    %v557 = vmul.f32 %v424, 0.5
    %v558 = vmul.f32 %v428, 0.5
    %v559 = vmul.f32 %v430, 0.5
    %v560 = vmul.f32 %v434, 0.5
    %v561 = vmul.f32 %v436, 0.5
    %v562 = vmul.f32 %v440, 0.5
    %v563 = vmul.f32 %v442, 0.5
    %v564 = vmul.f32 %v446, 0.5
    %v565 = vmul.f32 %v448, 0.5
    %v566 = vmul.f32 %v452, 0.5
    %v567 = vmul.f32 %v454, 0.5
    %v568 = vmul.f32 %v458, 0.5
    %v569 = vmul.f32 %v460, 0.5
    %v570 = vmul.f32 %v464, 0.5
    %v571 = vmul.f32 %v466, 0.5
    %v572 = vmul.f32 %v470, 0.5
    %v573 = vmul.f32 %v472, 0.5
    %v574 = vmul.f32 %v476, 0.5
    %v575 = vmul.f32 %v478, 0.5
    %v576 = vmul.f32 %v482, 0.5
    %v577 = vmul.f32 %v484, 0.5
    %v578 = vmul.f32 %v488, 0.5
    %v579 = vmul.f32 %v490, 0.5
    %v580 = vmul.f32 %v494, 0.5
    %v581 = vmul.f32 %v496, 0.5
    %v582 = vmul.f32 %v500, 0.5
    %v583 = vmul.f32 %v502, 0.5
    %v584 = vmul.f32 %v506, 0.5
    %v585 = vmul.f32 %v508, 0.5
    %v586 = vmul.f32 %v512, 0.5
    %v587 = vmul.f32 %v514, 0.5
    %v588 = vmul.f32 %v518, 0.5
    %v589 = vmul.f32 %v520, 0.5
    %v590 = vmul.f32 %v524, 0.5
    %v591 = vmul.f32 %v526, 0.5
    %v592 = vtanh.pop %v528
    %v593 = vtanh.pop %v529
    %v594 = vtanh.pop %v530
    %v595 = vtanh.pop %v531
    %v596 = vtanh.pop %v532
    %v597 = vtanh.pop %v533
    %v598 = vtanh.pop %v534
    %v599 = vtanh.pop %v535
    %v600 = vtanh.pop %v536
    %v601 = vtanh.pop %v537
    %v602 = vtanh.pop %v538
    %v603 = vtanh.pop %v539
    %v604 = vtanh.pop %v540
    %v605 = vtanh.pop %v541
    %v606 = vtanh.pop %v542
    %v607 = vtanh.pop %v543
    %v608 = vtanh.pop %v544
    %v609 = vtanh.pop %v545
    %v610 = vtanh.pop %v546
    %v611 = vtanh.pop %v547
    %v612 = vtanh.pop %v548
    %v613 = vtanh.pop %v549
    %v614 = vtanh.pop %v550
    %v615 = vtanh.pop %v551
    %v616 = vtanh.pop %v552
    %v617 = vtanh.pop %v553
    %v618 = vtanh.pop %v554
    %v619 = vtanh.pop %v555
    %v620 = vtanh.pop %v556
    %v621 = vtanh.pop %v557
    %v622 = vtanh.pop %v558
    %v623 = vtanh.pop %v559
    %v624 = vtanh.pop %v560
    %v625 = vtanh.pop %v561
    %v626 = vtanh.pop %v562
    %v627 = vtanh.pop %v563
    %v628 = vtanh.pop %v564
    %v629 = vtanh.pop %v565
    %v630 = vtanh.pop %v566
    %v631 = vtanh.pop %v567
    %v632 = vtanh.pop %v568
    %v633 = vtanh.pop %v569
    %v634 = vtanh.pop %v570
    %v635 = vtanh.pop %v571
    %v636 = vtanh.pop %v572
    %v637 = vtanh.pop %v573
    %v638 = vtanh.pop %v574
    %v639 = vtanh.pop %v575
    %v640 = vtanh.pop %v576
    %v641 = vtanh.pop %v577
    %v642 = vtanh.pop %v578
    %v643 = vtanh.pop %v579
    %v644 = vtanh.pop %v580
    %v645 = vtanh.pop %v581
    %v646 = vtanh.pop %v582
    %v647 = vtanh.pop %v583
    %v648 = vtanh.pop %v584
    %v649 = vtanh.pop %v585
    %v650 = vtanh.pop %v586
    %v651 = vtanh.pop %v587
    %v652 = vtanh.pop %v588
    %v653 = vtanh.pop %v589
    %v654 = vtanh.pop %v590
    %v655 = vtanh.pop %v591
    %v656 = vmul.f32 %v592, 0.4999999
    %v657 = vmul.f32 %v593, 0.4999999
    %v658 = vmul.f32 %v594, 0.4999999
    %v659 = vmul.f32 %v595, 0.4999999
    %v660 = vmul.f32 %v596, 0.4999999
    %v661 = vmul.f32 %v597, 0.4999999
    %v662 = vmul.f32 %v598, 0.4999999
    %v663 = vmul.f32 %v599, 0.4999999
    %v664 = vmul.f32 %v600, 0.4999999
    %v665 = vmul.f32 %v601, 0.4999999
    %v666 = vmul.f32 %v602, 0.4999999
    %v667 = vmul.f32 %v603, 0.4999999
    %v668 = vmul.f32 %v604, 0.4999999
    %v669 = vmul.f32 %v605, 0.4999999
    %v670 = vmul.f32 %v606, 0.4999999
    %v671 = vmul.f32 %v607, 0.4999999
    %v672 = vmul.f32 %v608, 0.4999999
    %v673 = vmul.f32 %v609, 0.4999999
    %v674 = vmul.f32 %v610, 0.4999999
    %v675 = vmul.f32 %v611, 0.4999999
    %v676 = vmul.f32 %v612, 0.4999999
    %v677 = vmul.f32 %v613, 0.4999999
    %v678 = vmul.f32 %v614, 0.4999999
    %v679 = vmul.f32 %v615, 0.4999999
    %v680 = vmul.f32 %v616, 0.4999999
    %v681 = vmul.f32 %v617, 0.4999999
    %v682 = vmul.f32 %v618, 0.4999999
    %v683 = vmul.f32 %v619, 0.4999999
    %v684 = vmul.f32 %v620, 0.4999999
    %v685 = vmul.f32 %v621, 0.4999999
    %v686 = vmul.f32 %v622, 0.4999999
    %v687 = vmul.f32 %v623, 0.4999999
    %v688 = vmul.f32 %v624, 0.4999999
    %v689 = vmul.f32 %v625, 0.4999999
    %v690 = vmul.f32 %v626, 0.4999999
    %v691 = vmul.f32 %v627, 0.4999999
    %v692 = vmul.f32 %v628, 0.4999999
    %v693 = vmul.f32 %v629, 0.4999999
    %v694 = vmul.f32 %v630, 0.4999999
    %v695 = vmul.f32 %v631, 0.4999999
    %v696 = vmul.f32 %v632, 0.4999999
    %v697 = vmul.f32 %v633, 0.4999999
    %v698 = vmul.f32 %v634, 0.4999999
    %v699 = vmul.f32 %v635, 0.4999999
    %v700 = vmul.f32 %v636, 0.4999999
    %v701 = vmul.f32 %v637, 0.4999999
    %v702 = vmul.f32 %v638, 0.4999999
    %v703 = vmul.f32 %v639, 0.4999999
    %v704 = vmul.f32 %v640, 0.4999999
    %v705 = vmul.f32 %v641, 0.4999999
    %v706 = vmul.f32 %v642, 0.4999999
    %v707 = vmul.f32 %v643, 0.4999999
    %v708 = vmul.f32 %v644, 0.4999999
    %v709 = vmul.f32 %v645, 0.4999999
    %v710 = vmul.f32 %v646, 0.4999999
    %v711 = vmul.f32 %v647, 0.4999999
    %v712 = vmul.f32 %v648, 0.4999999
    %v713 = vmul.f32 %v649, 0.4999999
    %v714 = vmul.f32 %v650, 0.4999999
    %v715 = vmul.f32 %v651, 0.4999999
    %v716 = vmul.f32 %v652, 0.4999999
    %v717 = vmul.f32 %v653, 0.4999999
    %v718 = vmul.f32 %v654, 0.4999999
    %v719 = vmul.f32 %v655, 0.4999999
    %v720 = vadd.f32 %v656, 0.5
    %v721 = vadd.f32 %v657, 0.5
    %v722 = vadd.f32 %v658, 0.5
    %v723 = vadd.f32 %v659, 0.5
    %v724 = vadd.f32 %v660, 0.5
    %v725 = vadd.f32 %v661, 0.5
    %v726 = vadd.f32 %v662, 0.5
    %v727 = vadd.f32 %v663, 0.5
    %v728 = vadd.f32 %v664, 0.5
    %v729 = vadd.f32 %v665, 0.5
    %v730 = vadd.f32 %v666, 0.5
    %v731 = vadd.f32 %v667, 0.5
    %v732 = vadd.f32 %v668, 0.5
    %v733 = vadd.f32 %v669, 0.5
    %v734 = vadd.f32 %v670, 0.5
    %v735 = vadd.f32 %v671, 0.5
    %v736 = vadd.f32 %v672, 0.5
    %v737 = vadd.f32 %v673, 0.5
    %v738 = vadd.f32 %v674, 0.5
    %v739 = vadd.f32 %v675, 0.5
    %v740 = vadd.f32 %v676, 0.5
    %v741 = vadd.f32 %v677, 0.5
    %v742 = vadd.f32 %v678, 0.5
    %v743 = vadd.f32 %v679, 0.5
    %v744 = vadd.f32 %v680, 0.5
    %v745 = vadd.f32 %v681, 0.5
    %v746 = vadd.f32 %v682, 0.5
    %v747 = vadd.f32 %v683, 0.5
    %v748 = vadd.f32 %v684, 0.5
    %v749 = vadd.f32 %v685, 0.5
    %v750 = vadd.f32 %v686, 0.5
    %v751 = vadd.f32 %v687, 0.5
    %v752 = vadd.f32 %v688, 0.5
    %v753 = vadd.f32 %v689, 0.5
    %v754 = vadd.f32 %v690, 0.5
    %v755 = vadd.f32 %v691, 0.5
    %v756 = vadd.f32 %v692, 0.5
    %v757 = vadd.f32 %v693, 0.5
    %v758 = vadd.f32 %v694, 0.5
    %v759 = vadd.f32 %v695, 0.5
    %v760 = vadd.f32 %v696, 0.5
    %v761 = vadd.f32 %v697, 0.5
    %v762 = vadd.f32 %v698, 0.5
    %v763 = vadd.f32 %v699, 0.5
    %v764 = vadd.f32 %v700, 0.5
    %v765 = vadd.f32 %v701, 0.5
    %v766 = vadd.f32 %v702, 0.5
    %v767 = vadd.f32 %v703, 0.5
    %v768 = vadd.f32 %v704, 0.5
    %v769 = vadd.f32 %v705, 0.5
    %v770 = vadd.f32 %v706, 0.5
    %v771 = vadd.f32 %v707, 0.5
    %v772 = vadd.f32 %v708, 0.5
    %v773 = vadd.f32 %v709, 0.5
    %v774 = vadd.f32 %v710, 0.5
    %v775 = vadd.f32 %v711, 0.5
    %v776 = vadd.f32 %v712, 0.5
    %v777 = vadd.f32 %v713, 0.5
    %v778 = vadd.f32 %v714, 0.5
    %v779 = vadd.f32 %v715, 0.5
    %v780 = vadd.f32 %v716, 0.5
    %v781 = vadd.f32 %v717, 0.5
    %v782 = vadd.f32 %v718, 0.5
    %v783 = vadd.f32 %v719, 0.5
    %784 = vst [vmem:[#allocation2] sm:$0xff] %v720
    %785 = vst [vmem:[#allocation2 + $0x8] sm:$0xff] %v721
    %786 = vst [vmem:[#allocation2 + $0x10] sm:$0xff] %v722
    %787 = vst [vmem:[#allocation2 + $0x18] sm:$0xff] %v723
    %788 = vst [vmem:[#allocation2 + $0x20] sm:$0xff] %v724
    %789 = vst [vmem:[#allocation2 + $0x28] sm:$0xff] %v725
    %790 = vst [vmem:[#allocation2 + $0x30] sm:$0xff] %v726
    %791 = vst [vmem:[#allocation2 + $0x38] sm:$0xff] %v727
    %792 = vst [vmem:[#allocation2 + $0x40] sm:$0xff] %v728
    %793 = vst [vmem:[#allocation2 + $0x48] sm:$0xff] %v729
    %794 = vst [vmem:[#allocation2 + $0x50] sm:$0xff] %v730
    %795 = vst [vmem:[#allocation2 + $0x58] sm:$0xff] %v731
    %796 = vst [vmem:[#allocation2 + $0x60] sm:$0xff] %v732
    %797 = vst [vmem:[#allocation2 + $0x68] sm:$0xff] %v733
    %798 = vst [vmem:[#allocation2 + $0x70] sm:$0xff] %v734
    %799 = vst [vmem:[#allocation2 + $0x78] sm:$0xff] %v735
    %800 = vst [vmem:[#allocation2 + $0x80] sm:$0xff] %v736
    %801 = vst [vmem:[#allocation2 + $0x88] sm:$0xff] %v737
    %802 = vst [vmem:[#allocation2 + $0x90] sm:$0xff] %v738
    %803 = vst [vmem:[#allocation2 + $0x98] sm:$0xff] %v739
    %804 = vst [vmem:[#allocation2 + $0xa0] sm:$0xff] %v740
    %805 = vst [vmem:[#allocation2 + $0xa8] sm:$0xff] %v741
    %806 = vst [vmem:[#allocation2 + $0xb0] sm:$0xff] %v742
    %807 = vst [vmem:[#allocation2 + $0xb8] sm:$0xff] %v743
    %808 = vst [vmem:[#allocation2 + $0xc0] sm:$0xff] %v744
    %809 = vst [vmem:[#allocation2 + $0xc8] sm:$0xff] %v745
    %810 = vst [vmem:[#allocation2 + $0xd0] sm:$0xff] %v746
    %811 = vst [vmem:[#allocation2 + $0xd8] sm:$0xff] %v747
    %812 = vst [vmem:[#allocation2 + $0xe0] sm:$0xff] %v748
    %813 = vst [vmem:[#allocation2 + $0xe8] sm:$0xff] %v749
    %814 = vst [vmem:[#allocation2 + $0xf0] sm:$0xff] %v750
    %815 = vst [vmem:[#allocation2 + $0xf8] sm:$0xff] %v751
    %816 = vst [vmem:[#allocation2 + $0x100] sm:$0xff] %v752
    %817 = vst [vmem:[#allocation2 + $0x108] sm:$0xff] %v753
    %818 = vst [vmem:[#allocation2 + $0x110] sm:$0xff] %v754
    %819 = vst [vmem:[#allocation2 + $0x118] sm:$0xff] %v755
    %820 = vst [vmem:[#allocation2 + $0x120] sm:$0xff] %v756
    %821 = vst [vmem:[#allocation2 + $0x128] sm:$0xff] %v757
    %822 = vst [vmem:[#allocation2 + $0x130] sm:$0xff] %v758
    %823 = vst [vmem:[#allocation2 + $0x138] sm:$0xff] %v759
    %824 = vst [vmem:[#allocation2 + $0x140] sm:$0xff] %v760
    %825 = vst [vmem:[#allocation2 + $0x148] sm:$0xff] %v761
    %826 = vst [vmem:[#allocation2 + $0x150] sm:$0xff] %v762
    %827 = vst [vmem:[#allocation2 + $0x158] sm:$0xff] %v763
    %828 = vst [vmem:[#allocation2 + $0x160] sm:$0xff] %v764
    %829 = vst [vmem:[#allocation2 + $0x168] sm:$0xff] %v765
    %830 = vst [vmem:[#allocation2 + $0x170] sm:$0xff] %v766
    %831 = vst [vmem:[#allocation2 + $0x178] sm:$0xff] %v767
    %832 = vst [vmem:[#allocation2 + $0x180] sm:$0xff] %v768
    %833 = vst [vmem:[#allocation2 + $0x188] sm:$0xff] %v769
    %834 = vst [vmem:[#allocation2 + $0x190] sm:$0xff] %v770
    %835 = vst [vmem:[#allocation2 + $0x198] sm:$0xff] %v771
    %836 = vst [vmem:[#allocation2 + $0x1a0] sm:$0xff] %v772
    %837 = vst [vmem:[#allocation2 + $0x1a8] sm:$0xff] %v773
    %838 = vst [vmem:[#allocation2 + $0x1b0] sm:$0xff] %v774
    %839 = vst [vmem:[#allocation2 + $0x1b8] sm:$0xff] %v775
    %840 = vst [vmem:[#allocation2 + $0x1c0] sm:$0xff] %v776
    %841 = vst [vmem:[#allocation2 + $0x1c8] sm:$0xff] %v777
    %842 = vst [vmem:[#allocation2 + $0x1d0] sm:$0xff] %v778
    %843 = vst [vmem:[#allocation2 + $0x1d8] sm:$0xff] %v779
    %844 = vst [vmem:[#allocation2 + $0x1e0] sm:$0xff] %v780
    %845 = vst [vmem:[#allocation2 + $0x1e8] sm:$0xff] %v781
    %846 = vst [vmem:[#allocation2 + $0x1f0] sm:$0xff] %v782
    %847 = vst [vmem:[#allocation2 + $0x1f8] sm:$0xff] %v783
    // Predicated region
    $region10: #{inner_product_decoder.1} parent=1 // pred_check
      _
    $region11: #{inner_product_decoder.1} parent=1 // pred_check_branch
      %849 = sbr.rel (0) target = $region13
    $region12: #{inner_product_decoder.1} parent=1 // pred_region
      %s851 = ssub.s32 8192, 8192
      %852 = vsyncadd [#allocation3], %s851
      %s853 = sshll.u32 [#allocation2], 4
      %s854 = int_to_ptr.vmem [resolvable:$true] %s853
      %859 = dma.vmem_to_hbm [thread:$0]  %s854, 8192, %s2, [#allocation3], 256, 256, 16
    $region13: #{inner_product_decoder.1} parent=1 // pred_fallthru
      _
    // Predicated region
    $region14: #{inner_product_decoder.1} parent=1 // pred_check
      _
    $region15: #{inner_product_decoder.1} parent=1 // pred_check_branch
      %861 = sbr.rel (0) target = $region17
    $region16: #{inner_product_decoder.1} parent=1 // pred_region
      %862 = dma.done [#allocation3], 8192
    $region17: #{inner_product_decoder.1} parent=1 // pred_fallthru
      _
    %863 = vsyncpa [#allocation3], 1

</llo_original>
